<compile_context>
chip_gen: v6e
topology: v6e:2x2x1
jax: 0.10.0
libtpu: 0.0.40
codegen_flags: <defaults>
</compile_context>

<pallas_src>
import jax
import jax.numpy as jnp
from jax.experimental import pallas as pl
from jax.experimental.pallas import tpu as pltpu


def _glimpse_kernel(t_ref, v_ref, lt_ref, lin_ref, w_ref, b_ref, out_ref, x_sc):
    t = t_ref[...]                       # [T, TB]  sorted timestamps (time major, batch on lanes)
    v = v_ref[...]                       # [T, TB]  values
    lt = lt_ref[...]                     # [1, TB]  glimpse location l_t
    lin = lin_ref[...]                   # [Q, 1]   flattened glimpse offsets (p = j*ngran + G)
    T = t.shape[0]
    Q = lin.shape[0]
    H = w_ref.shape[0]

    # Glimpse reference timesteps (getGlimpseTimesteps): q[p, b] = lin[p] + l_t[b]
    q = lin + lt                                                    # [Q, TB]

    # ---- linear 1-D interpolation of (t[:, b], v[:, b]) at q[:, b] -------------
    # scipy.interpolate.interp1d semantics: linear, bounds_error=False,
    # fill_value=(v[0], v[-1]).  Unrolled scan over the T-1 intervals, carrying
    # the active interval endpoints as four [Q, TB] vregs.  Each t/v column is
    # broadcast exactly once (broadcasts are carried, not re-emitted per select).
    tk = jnp.broadcast_to(t[1:2, :], q.shape)                       # t[k], k starts at 1
    vk = jnp.broadcast_to(v[1:2, :], q.shape)
    t_lo = jnp.broadcast_to(t[0:1, :], q.shape)
    v_lo = jnp.broadcast_to(v[0:1, :], q.shape)
    t_hi, v_hi = tk, vk
    for k in range(1, T - 1):                                       # static, fully unrolled
        tk1 = jnp.broadcast_to(t[k + 1:k + 2, :], q.shape)
        vk1 = jnp.broadcast_to(v[k + 1:k + 2, :], q.shape)
        cond = q >= tk                     # query at/after node k -> interval [k, k+1]
        t_lo = jnp.where(cond, tk, t_lo)
        v_lo = jnp.where(cond, vk, v_lo)
        t_hi = jnp.where(cond, tk1, t_hi)
        v_hi = jnp.where(cond, vk1, v_hi)
        tk, vk = tk1, vk1
    # After the loop tk/vk hold t[T-1]/v[T-1] broadcast to [Q, TB].

    # Exact divide (not approx reciprocal) for parity with the reference.
    y = v_lo + (v_hi - v_lo) * (q - t_lo) / (t_hi - t_lo)           # [Q, TB] glimpses (flattened)
    y = jnp.where(q < t[0:1, :], v[0:1, :], y)                      # left fill  -> v[0]
    y = jnp.where(q > tk, vk, y)                                    # right fill -> v[-1]

    # ---- grep = fc(cat(g, l_t)) as ONE MXU matmul ------------------------------
    # x = [y ; l_t] is [Q+1, TB]; w is the torch-layout fc weight [H, Q+1].
    x_sc[0:Q, :] = y
    x_sc[Q:Q + 1, :] = lt
    grep = jnp.dot(w_ref[...], x_sc[...], preferred_element_type=jnp.float32)   # [H, TB]
    grep = grep + b_ref[...]                                        # bias [H, 1] broadcast

    # Merged output block: rows 0..H-1 = grep^T, row H = g[:, Q // 2].
    out_ref[0:H, :] = grep.astype(out_ref.dtype)
    out_ref[H:H + 1, :] = y[Q // 2:Q // 2 + 1, :].astype(out_ref.dtype)


def make_lin_table(ngran, nglimpse, gwidth):
    """Flattened glimpse-offset table, index p = j * ngran + G (matches torch reshape)."""
    cols = []
    for G in range(ngran):
        half = gwidth * (G * 5 + 1) / 2.0
        cols.append(jnp.linspace(-half, half, nglimpse, dtype=jnp.float32))
    lin = jnp.stack(cols, axis=1)            # [nglimpse, ngran]
    return lin.reshape(-1)                   # [nglimpse * ngran]


def _round_up(x, m):
    return (x + m - 1) // m * m


def glimpse_network_forward(timesteps, values, l_t, lin_flat, w_fc, b_fc):
    """timesteps, values: [T, B] (torch convention, sorted along T per batch);
    l_t: [B, 1]; w_fc: [nhid, Q+1] (torch nn.Linear weight layout); b_fc: [nhid].
    Returns (grep [B, nhid], g_mid [B])."""
    t = timesteps.astype(jnp.float32)                     # [T, B] — batch on lanes
    v = values.astype(jnp.float32)
    T, B = t.shape
    Q = lin_flat.shape[0]
    H = w_fc.shape[0]

    # Batch (lane) tiling: single full-width block for small B, 128-lane tiles
    # otherwise.  Per-step VMEM at TILE_B=128 is only a few hundred KB, so the
    # same tile fits v5e/v6e (128 MiB) and v7x (64 MiB) with double-buffering.
    LANE = 128
    if B <= LANE:
        tile_b, b_pad = B, B
    else:
        tile_b = LANE
        b_pad = _round_up(B, tile_b)

    lt_row = l_t.astype(jnp.float32).reshape(1, B)
    if b_pad != B:
        t = jnp.pad(t, ((0, 0), (0, b_pad - B)))
        v = jnp.pad(v, ((0, 0), (0, b_pad - B)))
        lt_row = jnp.pad(lt_row, ((0, 0), (0, b_pad - B)))

    lin_col = lin_flat.reshape(Q, 1).astype(jnp.float32)
    w = w_fc.astype(jnp.float32)                          # [H, Q+1]
    b_col = b_fc.reshape(H, 1).astype(jnp.float32)

    out = pl.pallas_call(
        _glimpse_kernel,
        out_shape=jax.ShapeDtypeStruct((H + 1, b_pad), jnp.float32),
        grid=(b_pad // tile_b,),
        in_specs=[
            pl.BlockSpec((T, tile_b), lambda i: (0, i)),      # timesteps tile
            pl.BlockSpec((T, tile_b), lambda i: (0, i)),      # values tile
            pl.BlockSpec((1, tile_b), lambda i: (0, i)),      # l_t row
            pl.BlockSpec((Q, 1), lambda i: (0, 0)),           # glimpse offsets
            pl.BlockSpec((H, Q + 1), lambda i: (0, 0)),       # fc weight (torch layout)
            pl.BlockSpec((H, 1), lambda i: (0, 0)),           # fc bias
        ],
        out_specs=pl.BlockSpec((H + 1, tile_b), lambda i: (0, i)),
        scratch_shapes=[pltpu.VMEM((Q + 1, tile_b), jnp.float32)],
        compiler_params=pltpu.CompilerParams(dimension_semantics=("parallel",)),
    )(t, v, lt_row, lin_col, w, b_col)

    grep = out[:H, :B].T                                  # [B, H]
    g_mid = out[H, :B]                                    # [B]
    return grep, g_mid


def _reference_forward(timesteps, values, l_t, lin_flat, w_fc, b_fc):
    """Pure-JAX reference (interp1d-equivalent via jnp.interp) for validation."""
    t_bt = jnp.transpose(timesteps).astype(jnp.float32)   # [B, T]
    v_bt = jnp.transpose(values).astype(jnp.float32)
    lt = l_t.astype(jnp.float32)
    q = lt + lin_flat[None, :].astype(jnp.float32)        # [B, Q]
    y = jax.vmap(jnp.interp)(q, t_bt, v_bt)               # [B, Q]
    x = jnp.concatenate([y, lt], axis=1)                  # [B, Q+1]
    grep = x @ w_fc.T.astype(jnp.float32) + b_fc.astype(jnp.float32)
    return grep, y[:, y.shape[1] // 2]


if __name__ == "__main__":
    # Module hyper-params (nn.Linear(ngran*nglimpse + 1, nhid))
    B, T = 2, 16
    ngran, nglimpse, gwidth = 3, 8, 0.2
    nhid = 32
    Q = ngran * nglimpse

    key = jax.random.PRNGKey(0)
    k1, k2, k3, k4, k5 = jax.random.split(key, 5)

    # Sorted (increasing) timestamps per batch, torch-style [T, B] inputs.
    t_bt = jnp.sort(jax.random.uniform(k1, (B, T), minval=0.0, maxval=10.0), axis=1)
    timesteps = t_bt.T                                          # [T, B]
    values = jax.random.normal(k2, (T, B), dtype=jnp.float32)   # [T, B]
    l_t = jax.random.uniform(k3, (B, 1), minval=2.0, maxval=8.0)

    # Deterministic synthetic fc parameters in torch nn.Linear layout [nhid, Q+1].
    w_fc = 0.1 * jax.random.normal(k4, (nhid, Q + 1), dtype=jnp.float32)
    b_fc = 0.1 * jax.random.normal(k5, (nhid,), dtype=jnp.float32)

    lin_flat = make_lin_table(ngran, nglimpse, gwidth)

    grep, g_mid = glimpse_network_forward(timesteps, values, l_t, lin_flat, w_fc, b_fc)
    jax.block_until_ready((grep, g_mid))

    grep_ref, g_mid_ref = _reference_forward(timesteps, values, l_t, lin_flat, w_fc, b_fc)

    assert grep.shape == (B, nhid) and g_mid.shape == (B,)
    assert jnp.allclose(grep, grep_ref, rtol=2e-3, atol=2e-3)
    assert jnp.allclose(g_mid, g_mid_ref, rtol=2e-3, atol=2e-3)
    print("KERNEL_OK")
</pallas_src>

<mosaic_0001>
module attributes {stable_mosaic.version = 11 : i64} {
  func.func @_glimpse_kernel(%arg0: i32, %arg1: memref<16x2xf32, #tpu.memory_space<vmem>>, %arg2: memref<16x2xf32, #tpu.memory_space<vmem>>, %arg3: memref<1x2xf32, #tpu.memory_space<vmem>>, %arg4: memref<24x1xf32, #tpu.memory_space<vmem>>, %arg5: memref<32x25xf32, #tpu.memory_space<vmem>>, %arg6: memref<32x1xf32, #tpu.memory_space<vmem>>, %arg7: memref<33x2xf32, #tpu.memory_space<vmem>>, %arg8: memref<25x2xf32, #tpu.memory_space<vmem>>) attributes {dimension_semantics = [#tpu.dimension_semantics<parallel>], iteration_bounds = array<i64: 1>, scalar_prefetch = 0 : i64, scratch_operands = 1 : i64, tpu.core_type = #tpu.core_type<tc>, window_params = [{transform_indices = @transform_0, window_bounds = array<i64: 16, 2>}, {transform_indices = @transform_1, window_bounds = array<i64: 16, 2>}, {transform_indices = @transform_2, window_bounds = array<i64: 1, 2>}, {pipeline_mode = #tpu.pipeline_mode<synchronous>, transform_indices = @transform_3, window_bounds = array<i64: 24, 1>}, {pipeline_mode = #tpu.pipeline_mode<synchronous>, transform_indices = @transform_4, window_bounds = array<i64: 32, 25>}, {pipeline_mode = #tpu.pipeline_mode<synchronous>, transform_indices = @transform_5, window_bounds = array<i64: 32, 1>}, {transform_indices = @transform_6, window_bounds = array<i64: 33, 2>}]} {
    %c0 = arith.constant 0 : index
    %c0_0 = arith.constant 0 : index
    %0 = vector.load %arg1[%c0, %c0_0] : memref<16x2xf32, #tpu.memory_space<vmem>>, vector<16x2xf32>
    %c0_1 = arith.constant 0 : index
    %c0_2 = arith.constant 0 : index
    %1 = vector.load %arg2[%c0_1, %c0_2] : memref<16x2xf32, #tpu.memory_space<vmem>>, vector<16x2xf32>
    %c0_3 = arith.constant 0 : index
    %c0_4 = arith.constant 0 : index
    %2 = vector.load %arg3[%c0_3, %c0_4] : memref<1x2xf32, #tpu.memory_space<vmem>>, vector<1x2xf32>
    %c0_5 = arith.constant 0 : index
    %c0_6 = arith.constant 0 : index
    %3 = vector.load %arg4[%c0_5, %c0_6] : memref<24x1xf32, #tpu.memory_space<vmem>>, vector<24x1xf32>
    %4 = vector.broadcast %3 : vector<24x1xf32> to vector<24x2xf32>
    %5 = vector.broadcast %2 : vector<1x2xf32> to vector<24x2xf32>
    %6 = arith.addf %4, %5 : vector<24x2xf32>
    %7 = vector.extract_strided_slice %0 {offsets = [1, 0], sizes = [1, 2], strides = [1, 1]} : vector<16x2xf32> to vector<1x2xf32>
    %8 = vector.shape_cast %7 : vector<1x2xf32> to vector<1x2xf32>
    %9 = vector.broadcast %8 : vector<1x2xf32> to vector<24x2xf32>
    %10 = vector.extract_strided_slice %1 {offsets = [1, 0], sizes = [1, 2], strides = [1, 1]} : vector<16x2xf32> to vector<1x2xf32>
    %11 = vector.shape_cast %10 : vector<1x2xf32> to vector<1x2xf32>
    %12 = vector.broadcast %11 : vector<1x2xf32> to vector<24x2xf32>
    %13 = vector.extract_strided_slice %0 {offsets = [0, 0], sizes = [1, 2], strides = [1, 1]} : vector<16x2xf32> to vector<1x2xf32>
    %14 = vector.shape_cast %13 : vector<1x2xf32> to vector<1x2xf32>
    %15 = vector.broadcast %14 : vector<1x2xf32> to vector<24x2xf32>
    %16 = vector.extract_strided_slice %1 {offsets = [0, 0], sizes = [1, 2], strides = [1, 1]} : vector<16x2xf32> to vector<1x2xf32>
    %17 = vector.shape_cast %16 : vector<1x2xf32> to vector<1x2xf32>
    %18 = vector.broadcast %17 : vector<1x2xf32> to vector<24x2xf32>
    %19 = vector.extract_strided_slice %0 {offsets = [2, 0], sizes = [1, 2], strides = [1, 1]} : vector<16x2xf32> to vector<1x2xf32>
    %20 = vector.shape_cast %19 : vector<1x2xf32> to vector<1x2xf32>
    %21 = vector.broadcast %20 : vector<1x2xf32> to vector<24x2xf32>
    %22 = vector.extract_strided_slice %1 {offsets = [2, 0], sizes = [1, 2], strides = [1, 1]} : vector<16x2xf32> to vector<1x2xf32>
    %23 = vector.shape_cast %22 : vector<1x2xf32> to vector<1x2xf32>
    %24 = vector.broadcast %23 : vector<1x2xf32> to vector<24x2xf32>
    %25 = arith.cmpf oge, %6, %9 : vector<24x2xf32>
    %26 = arith.select %25, %9, %15 : vector<24x2xi1>, vector<24x2xf32>
    %27 = arith.select %25, %12, %18 : vector<24x2xi1>, vector<24x2xf32>
    %28 = arith.select %25, %21, %9 : vector<24x2xi1>, vector<24x2xf32>
    %29 = arith.select %25, %24, %12 : vector<24x2xi1>, vector<24x2xf32>
    %30 = vector.extract_strided_slice %0 {offsets = [3, 0], sizes = [1, 2], strides = [1, 1]} : vector<16x2xf32> to vector<1x2xf32>
    %31 = vector.shape_cast %30 : vector<1x2xf32> to vector<1x2xf32>
    %32 = vector.broadcast %31 : vector<1x2xf32> to vector<24x2xf32>
    %33 = vector.extract_strided_slice %1 {offsets = [3, 0], sizes = [1, 2], strides = [1, 1]} : vector<16x2xf32> to vector<1x2xf32>
    %34 = vector.shape_cast %33 : vector<1x2xf32> to vector<1x2xf32>
    %35 = vector.broadcast %34 : vector<1x2xf32> to vector<24x2xf32>
    %36 = arith.cmpf oge, %6, %21 : vector<24x2xf32>
    %37 = arith.select %36, %21, %26 : vector<24x2xi1>, vector<24x2xf32>
    %38 = arith.select %36, %24, %27 : vector<24x2xi1>, vector<24x2xf32>
    %39 = arith.select %36, %32, %28 : vector<24x2xi1>, vector<24x2xf32>
    %40 = arith.select %36, %35, %29 : vector<24x2xi1>, vector<24x2xf32>
    %41 = vector.extract_strided_slice %0 {offsets = [4, 0], sizes = [1, 2], strides = [1, 1]} : vector<16x2xf32> to vector<1x2xf32>
    %42 = vector.shape_cast %41 : vector<1x2xf32> to vector<1x2xf32>
    %43 = vector.broadcast %42 : vector<1x2xf32> to vector<24x2xf32>
    %44 = vector.extract_strided_slice %1 {offsets = [4, 0], sizes = [1, 2], strides = [1, 1]} : vector<16x2xf32> to vector<1x2xf32>
    %45 = vector.shape_cast %44 : vector<1x2xf32> to vector<1x2xf32>
    %46 = vector.broadcast %45 : vector<1x2xf32> to vector<24x2xf32>
    %47 = arith.cmpf oge, %6, %32 : vector<24x2xf32>
    %48 = arith.select %47, %32, %37 : vector<24x2xi1>, vector<24x2xf32>
    %49 = arith.select %47, %35, %38 : vector<24x2xi1>, vector<24x2xf32>
    %50 = arith.select %47, %43, %39 : vector<24x2xi1>, vector<24x2xf32>
    %51 = arith.select %47, %46, %40 : vector<24x2xi1>, vector<24x2xf32>
    %52 = vector.extract_strided_slice %0 {offsets = [5, 0], sizes = [1, 2], strides = [1, 1]} : vector<16x2xf32> to vector<1x2xf32>
    %53 = vector.shape_cast %52 : vector<1x2xf32> to vector<1x2xf32>
    %54 = vector.broadcast %53 : vector<1x2xf32> to vector<24x2xf32>
    %55 = vector.extract_strided_slice %1 {offsets = [5, 0], sizes = [1, 2], strides = [1, 1]} : vector<16x2xf32> to vector<1x2xf32>
    %56 = vector.shape_cast %55 : vector<1x2xf32> to vector<1x2xf32>
    %57 = vector.broadcast %56 : vector<1x2xf32> to vector<24x2xf32>
    %58 = arith.cmpf oge, %6, %43 : vector<24x2xf32>
    %59 = arith.select %58, %43, %48 : vector<24x2xi1>, vector<24x2xf32>
    %60 = arith.select %58, %46, %49 : vector<24x2xi1>, vector<24x2xf32>
    %61 = arith.select %58, %54, %50 : vector<24x2xi1>, vector<24x2xf32>
    %62 = arith.select %58, %57, %51 : vector<24x2xi1>, vector<24x2xf32>
    %63 = vector.extract_strided_slice %0 {offsets = [6, 0], sizes = [1, 2], strides = [1, 1]} : vector<16x2xf32> to vector<1x2xf32>
    %64 = vector.shape_cast %63 : vector<1x2xf32> to vector<1x2xf32>
    %65 = vector.broadcast %64 : vector<1x2xf32> to vector<24x2xf32>
    %66 = vector.extract_strided_slice %1 {offsets = [6, 0], sizes = [1, 2], strides = [1, 1]} : vector<16x2xf32> to vector<1x2xf32>
    %67 = vector.shape_cast %66 : vector<1x2xf32> to vector<1x2xf32>
    %68 = vector.broadcast %67 : vector<1x2xf32> to vector<24x2xf32>
    %69 = arith.cmpf oge, %6, %54 : vector<24x2xf32>
    %70 = arith.select %69, %54, %59 : vector<24x2xi1>, vector<24x2xf32>
    %71 = arith.select %69, %57, %60 : vector<24x2xi1>, vector<24x2xf32>
    %72 = arith.select %69, %65, %61 : vector<24x2xi1>, vector<24x2xf32>
    %73 = arith.select %69, %68, %62 : vector<24x2xi1>, vector<24x2xf32>
    %74 = vector.extract_strided_slice %0 {offsets = [7, 0], sizes = [1, 2], strides = [1, 1]} : vector<16x2xf32> to vector<1x2xf32>
    %75 = vector.shape_cast %74 : vector<1x2xf32> to vector<1x2xf32>
    %76 = vector.broadcast %75 : vector<1x2xf32> to vector<24x2xf32>
    %77 = vector.extract_strided_slice %1 {offsets = [7, 0], sizes = [1, 2], strides = [1, 1]} : vector<16x2xf32> to vector<1x2xf32>
    %78 = vector.shape_cast %77 : vector<1x2xf32> to vector<1x2xf32>
    %79 = vector.broadcast %78 : vector<1x2xf32> to vector<24x2xf32>
    %80 = arith.cmpf oge, %6, %65 : vector<24x2xf32>
    %81 = arith.select %80, %65, %70 : vector<24x2xi1>, vector<24x2xf32>
    %82 = arith.select %80, %68, %71 : vector<24x2xi1>, vector<24x2xf32>
    %83 = arith.select %80, %76, %72 : vector<24x2xi1>, vector<24x2xf32>
    %84 = arith.select %80, %79, %73 : vector<24x2xi1>, vector<24x2xf32>
    %85 = vector.extract_strided_slice %0 {offsets = [8, 0], sizes = [1, 2], strides = [1, 1]} : vector<16x2xf32> to vector<1x2xf32>
    %86 = vector.shape_cast %85 : vector<1x2xf32> to vector<1x2xf32>
    %87 = vector.broadcast %86 : vector<1x2xf32> to vector<24x2xf32>
    %88 = vector.extract_strided_slice %1 {offsets = [8, 0], sizes = [1, 2], strides = [1, 1]} : vector<16x2xf32> to vector<1x2xf32>
    %89 = vector.shape_cast %88 : vector<1x2xf32> to vector<1x2xf32>
    %90 = vector.broadcast %89 : vector<1x2xf32> to vector<24x2xf32>
    %91 = arith.cmpf oge, %6, %76 : vector<24x2xf32>
    %92 = arith.select %91, %76, %81 : vector<24x2xi1>, vector<24x2xf32>
    %93 = arith.select %91, %79, %82 : vector<24x2xi1>, vector<24x2xf32>
    %94 = arith.select %91, %87, %83 : vector<24x2xi1>, vector<24x2xf32>
    %95 = arith.select %91, %90, %84 : vector<24x2xi1>, vector<24x2xf32>
    %96 = vector.extract_strided_slice %0 {offsets = [9, 0], sizes = [1, 2], strides = [1, 1]} : vector<16x2xf32> to vector<1x2xf32>
    %97 = vector.shape_cast %96 : vector<1x2xf32> to vector<1x2xf32>
    %98 = vector.broadcast %97 : vector<1x2xf32> to vector<24x2xf32>
    %99 = vector.extract_strided_slice %1 {offsets = [9, 0], sizes = [1, 2], strides = [1, 1]} : vector<16x2xf32> to vector<1x2xf32>
    %100 = vector.shape_cast %99 : vector<1x2xf32> to vector<1x2xf32>
    %101 = vector.broadcast %100 : vector<1x2xf32> to vector<24x2xf32>
    %102 = arith.cmpf oge, %6, %87 : vector<24x2xf32>
    %103 = arith.select %102, %87, %92 : vector<24x2xi1>, vector<24x2xf32>
    %104 = arith.select %102, %90, %93 : vector<24x2xi1>, vector<24x2xf32>
    %105 = arith.select %102, %98, %94 : vector<24x2xi1>, vector<24x2xf32>
    %106 = arith.select %102, %101, %95 : vector<24x2xi1>, vector<24x2xf32>
    %107 = vector.extract_strided_slice %0 {offsets = [10, 0], sizes = [1, 2], strides = [1, 1]} : vector<16x2xf32> to vector<1x2xf32>
    %108 = vector.shape_cast %107 : vector<1x2xf32> to vector<1x2xf32>
    %109 = vector.broadcast %108 : vector<1x2xf32> to vector<24x2xf32>
    %110 = vector.extract_strided_slice %1 {offsets = [10, 0], sizes = [1, 2], strides = [1, 1]} : vector<16x2xf32> to vector<1x2xf32>
    %111 = vector.shape_cast %110 : vector<1x2xf32> to vector<1x2xf32>
    %112 = vector.broadcast %111 : vector<1x2xf32> to vector<24x2xf32>
    %113 = arith.cmpf oge, %6, %98 : vector<24x2xf32>
    %114 = arith.select %113, %98, %103 : vector<24x2xi1>, vector<24x2xf32>
    %115 = arith.select %113, %101, %104 : vector<24x2xi1>, vector<24x2xf32>
    %116 = arith.select %113, %109, %105 : vector<24x2xi1>, vector<24x2xf32>
    %117 = arith.select %113, %112, %106 : vector<24x2xi1>, vector<24x2xf32>
    %118 = vector.extract_strided_slice %0 {offsets = [11, 0], sizes = [1, 2], strides = [1, 1]} : vector<16x2xf32> to vector<1x2xf32>
    %119 = vector.shape_cast %118 : vector<1x2xf32> to vector<1x2xf32>
    %120 = vector.broadcast %119 : vector<1x2xf32> to vector<24x2xf32>
    %121 = vector.extract_strided_slice %1 {offsets = [11, 0], sizes = [1, 2], strides = [1, 1]} : vector<16x2xf32> to vector<1x2xf32>
    %122 = vector.shape_cast %121 : vector<1x2xf32> to vector<1x2xf32>
    %123 = vector.broadcast %122 : vector<1x2xf32> to vector<24x2xf32>
    %124 = arith.cmpf oge, %6, %109 : vector<24x2xf32>
    %125 = arith.select %124, %109, %114 : vector<24x2xi1>, vector<24x2xf32>
    %126 = arith.select %124, %112, %115 : vector<24x2xi1>, vector<24x2xf32>
    %127 = arith.select %124, %120, %116 : vector<24x2xi1>, vector<24x2xf32>
    %128 = arith.select %124, %123, %117 : vector<24x2xi1>, vector<24x2xf32>
    %129 = vector.extract_strided_slice %0 {offsets = [12, 0], sizes = [1, 2], strides = [1, 1]} : vector<16x2xf32> to vector<1x2xf32>
    %130 = vector.shape_cast %129 : vector<1x2xf32> to vector<1x2xf32>
    %131 = vector.broadcast %130 : vector<1x2xf32> to vector<24x2xf32>
    %132 = vector.extract_strided_slice %1 {offsets = [12, 0], sizes = [1, 2], strides = [1, 1]} : vector<16x2xf32> to vector<1x2xf32>
    %133 = vector.shape_cast %132 : vector<1x2xf32> to vector<1x2xf32>
    %134 = vector.broadcast %133 : vector<1x2xf32> to vector<24x2xf32>
    %135 = arith.cmpf oge, %6, %120 : vector<24x2xf32>
    %136 = arith.select %135, %120, %125 : vector<24x2xi1>, vector<24x2xf32>
    %137 = arith.select %135, %123, %126 : vector<24x2xi1>, vector<24x2xf32>
    %138 = arith.select %135, %131, %127 : vector<24x2xi1>, vector<24x2xf32>
    %139 = arith.select %135, %134, %128 : vector<24x2xi1>, vector<24x2xf32>
    %140 = vector.extract_strided_slice %0 {offsets = [13, 0], sizes = [1, 2], strides = [1, 1]} : vector<16x2xf32> to vector<1x2xf32>
    %141 = vector.shape_cast %140 : vector<1x2xf32> to vector<1x2xf32>
    %142 = vector.broadcast %141 : vector<1x2xf32> to vector<24x2xf32>
    %143 = vector.extract_strided_slice %1 {offsets = [13, 0], sizes = [1, 2], strides = [1, 1]} : vector<16x2xf32> to vector<1x2xf32>
    %144 = vector.shape_cast %143 : vector<1x2xf32> to vector<1x2xf32>
    %145 = vector.broadcast %144 : vector<1x2xf32> to vector<24x2xf32>
    %146 = arith.cmpf oge, %6, %131 : vector<24x2xf32>
    %147 = arith.select %146, %131, %136 : vector<24x2xi1>, vector<24x2xf32>
    %148 = arith.select %146, %134, %137 : vector<24x2xi1>, vector<24x2xf32>
    %149 = arith.select %146, %142, %138 : vector<24x2xi1>, vector<24x2xf32>
    %150 = arith.select %146, %145, %139 : vector<24x2xi1>, vector<24x2xf32>
    %151 = vector.extract_strided_slice %0 {offsets = [14, 0], sizes = [1, 2], strides = [1, 1]} : vector<16x2xf32> to vector<1x2xf32>
    %152 = vector.shape_cast %151 : vector<1x2xf32> to vector<1x2xf32>
    %153 = vector.broadcast %152 : vector<1x2xf32> to vector<24x2xf32>
    %154 = vector.extract_strided_slice %1 {offsets = [14, 0], sizes = [1, 2], strides = [1, 1]} : vector<16x2xf32> to vector<1x2xf32>
    %155 = vector.shape_cast %154 : vector<1x2xf32> to vector<1x2xf32>
    %156 = vector.broadcast %155 : vector<1x2xf32> to vector<24x2xf32>
    %157 = arith.cmpf oge, %6, %142 : vector<24x2xf32>
    %158 = arith.select %157, %142, %147 : vector<24x2xi1>, vector<24x2xf32>
    %159 = arith.select %157, %145, %148 : vector<24x2xi1>, vector<24x2xf32>
    %160 = arith.select %157, %153, %149 : vector<24x2xi1>, vector<24x2xf32>
    %161 = arith.select %157, %156, %150 : vector<24x2xi1>, vector<24x2xf32>
    %162 = vector.extract_strided_slice %0 {offsets = [15, 0], sizes = [1, 2], strides = [1, 1]} : vector<16x2xf32> to vector<1x2xf32>
    %163 = vector.shape_cast %162 : vector<1x2xf32> to vector<1x2xf32>
    %164 = vector.broadcast %163 : vector<1x2xf32> to vector<24x2xf32>
    %165 = vector.extract_strided_slice %1 {offsets = [15, 0], sizes = [1, 2], strides = [1, 1]} : vector<16x2xf32> to vector<1x2xf32>
    %166 = vector.shape_cast %165 : vector<1x2xf32> to vector<1x2xf32>
    %167 = vector.broadcast %166 : vector<1x2xf32> to vector<24x2xf32>
    %168 = arith.cmpf oge, %6, %153 : vector<24x2xf32>
    %169 = arith.select %168, %153, %158 : vector<24x2xi1>, vector<24x2xf32>
    %170 = arith.select %168, %156, %159 : vector<24x2xi1>, vector<24x2xf32>
    %171 = arith.select %168, %164, %160 : vector<24x2xi1>, vector<24x2xf32>
    %172 = arith.select %168, %167, %161 : vector<24x2xi1>, vector<24x2xf32>
    %173 = arith.subf %172, %170 : vector<24x2xf32>
    %174 = arith.subf %6, %169 : vector<24x2xf32>
    %175 = arith.mulf %173, %174 : vector<24x2xf32>
    %176 = arith.subf %171, %169 : vector<24x2xf32>
    %177 = arith.divf %175, %176 : vector<24x2xf32>
    %178 = arith.addf %170, %177 : vector<24x2xf32>
    %179 = vector.extract_strided_slice %0 {offsets = [0, 0], sizes = [1, 2], strides = [1, 1]} : vector<16x2xf32> to vector<1x2xf32>
    %180 = vector.broadcast %179 : vector<1x2xf32> to vector<24x2xf32>
    %181 = arith.cmpf olt, %6, %180 : vector<24x2xf32>
    %182 = vector.extract_strided_slice %1 {offsets = [0, 0], sizes = [1, 2], strides = [1, 1]} : vector<16x2xf32> to vector<1x2xf32>
    %183 = vector.shape_cast %182 : vector<1x2xf32> to vector<1x2xf32>
    %184 = vector.broadcast %183 : vector<1x2xf32> to vector<24x2xf32>
    %185 = arith.select %181, %184, %178 : vector<24x2xi1>, vector<24x2xf32>
    %186 = arith.cmpf ogt, %6, %164 : vector<24x2xf32>
    %187 = arith.select %186, %167, %185 : vector<24x2xi1>, vector<24x2xf32>
    %c0_7 = arith.constant 0 : index
    %c0_8 = arith.constant 0 : index
    %188 = vector.load %arg8[%c0_7, %c0_8] : memref<25x2xf32, #tpu.memory_space<vmem>>, vector<24x2xf32>
    tpu.vector_store %arg8[%c0_7, %c0_8], %187 {strides = array<i32>} : memref<25x2xf32, #tpu.memory_space<vmem>>, vector<24x2xf32>,
    %c24 = arith.constant 24 : index
    %c0_9 = arith.constant 0 : index
    %189 = vector.load %arg8[%c24, %c0_9] : memref<25x2xf32, #tpu.memory_space<vmem>>, vector<1x2xf32>
    tpu.vector_store %arg8[%c24, %c0_9], %2 {strides = array<i32>} : memref<25x2xf32, #tpu.memory_space<vmem>>, vector<1x2xf32>,
    %c0_10 = arith.constant 0 : index
    %c0_11 = arith.constant 0 : index
    %190 = vector.load %arg5[%c0_10, %c0_11] : memref<32x25xf32, #tpu.memory_space<vmem>>, vector<32x25xf32>
    %c0_12 = arith.constant 0 : index
    %c0_13 = arith.constant 0 : index
    %191 = vector.load %arg8[%c0_12, %c0_13] : memref<25x2xf32, #tpu.memory_space<vmem>>, vector<25x2xf32>
    %cst = arith.constant dense<0.000000e+00> : vector<32x2xf32>
    %192 = tpu.matmul %190, %191, %cst {dimension_numbers = #tpu.dot_dimension_numbers<[1], [0], [0], [1], [0, 0, 1, 1], [], []>} : vector<32x25xf32>, vector<25x2xf32>, vector<32x2xf32> -> vector<32x2xf32>
    %c0_14 = arith.constant 0 : index
    %c0_15 = arith.constant 0 : index
    %193 = vector.load %arg6[%c0_14, %c0_15] : memref<32x1xf32, #tpu.memory_space<vmem>>, vector<32x1xf32>
    %194 = vector.broadcast %193 : vector<32x1xf32> to vector<32x2xf32>
    %195 = arith.addf %192, %194 : vector<32x2xf32>
    %c0_16 = arith.constant 0 : index
    %c0_17 = arith.constant 0 : index
    %196 = vector.load %arg7[%c0_16, %c0_17] : memref<33x2xf32, #tpu.memory_space<vmem>>, vector<32x2xf32>
    tpu.vector_store %arg7[%c0_16, %c0_17], %195 {strides = array<i32>} : memref<33x2xf32, #tpu.memory_space<vmem>>, vector<32x2xf32>,
    %197 = vector.extract_strided_slice %187 {offsets = [12, 0], sizes = [1, 2], strides = [1, 1]} : vector<24x2xf32> to vector<1x2xf32>
    %c32 = arith.constant 32 : index
    %c0_18 = arith.constant 0 : index
    %198 = vector.load %arg7[%c32, %c0_18] : memref<33x2xf32, #tpu.memory_space<vmem>>, vector<1x2xf32>
    tpu.vector_store %arg7[%c32, %c0_18], %197 {strides = array<i32>} : memref<33x2xf32, #tpu.memory_space<vmem>>, vector<1x2xf32>,
    return
  }
  func.func @transform_0(%arg0: i32) -> (i32, i32) {
    %c0_i32 = arith.constant 0 : i32
    %c0_i32_0 = arith.constant 0 : i32
    return %c0_i32, %arg0 : i32, i32
  }
  func.func @transform_1(%arg0: i32) -> (i32, i32) {
    %c0_i32 = arith.constant 0 : i32
    %c0_i32_0 = arith.constant 0 : i32
    return %c0_i32, %arg0 : i32, i32
  }
  func.func @transform_2(%arg0: i32) -> (i32, i32) {
    %c0_i32 = arith.constant 0 : i32
    %c0_i32_0 = arith.constant 0 : i32
    return %c0_i32, %arg0 : i32, i32
  }
  func.func @transform_3(%arg0: i32) -> (i32, i32) {
    %c0_i32 = arith.constant 0 : i32
    %c0_i32_0 = arith.constant 0 : i32
    %c0_i32_1 = arith.constant 0 : i32
    return %c0_i32, %c0_i32_0 : i32, i32
  }
  func.func @transform_4(%arg0: i32) -> (i32, i32) {
    %c0_i32 = arith.constant 0 : i32
    %c0_i32_0 = arith.constant 0 : i32
    %c0_i32_1 = arith.constant 0 : i32
    return %c0_i32, %c0_i32_0 : i32, i32
  }
  func.func @transform_5(%arg0: i32) -> (i32, i32) {
    %c0_i32 = arith.constant 0 : i32
    %c0_i32_0 = arith.constant 0 : i32
    %c0_i32_1 = arith.constant 0 : i32
    return %c0_i32, %c0_i32_0 : i32, i32
  }
  func.func @transform_6(%arg0: i32) -> (i32, i32) {
    %c0_i32 = arith.constant 0 : i32
    %c0_i32_0 = arith.constant 0 : i32
    return %c0_i32, %arg0 : i32, i32
  }
}

</mosaic_0001>

<llo_original>
// kernel: tpu_custom_call.1
$region0: #{tpu_custom_call.1}
  #allocation0 [shape = 'u32[]', space=smem, size = 0x4, offset = 0x4, fixed_abs, tag = 'smem constant byte address 0x4 - core index']
  #allocation1 [shape = 'u32[144,128]{1,0:T(1,128)}', space=vmem, size = 0x12000, scoped, tag = 'internal scratch']
  #allocation2 [shape = 'f32[25,2]{1,0:T(8,128)}', space=vmem, size = 0x4000, scoped, tag = 'scratch operand']
  %s0 = inlined_call_operand.vmem [shape: f32[16,2], index: 0, kind: input, shape index: {}]
  %s1 = inlined_call_operand.vmem [shape: f32[16,2], index: 1, kind: input, shape index: {}]
  %s2 = inlined_call_operand.vmem [shape: f32[1,2], index: 2, kind: input, shape index: {}]
  %s3 = inlined_call_operand.vmem [shape: f32[24,1], index: 3, kind: input, shape index: {}]
  %s4 = inlined_call_operand.vmem [shape: f32[32,25], index: 4, kind: input, shape index: {}]
  %s5 = inlined_call_operand.vmem [shape: f32[32,1], index: 5, kind: input, shape index: {}]
  %s6 = inlined_call_operand.vmem [shape: f32[33,2], index: 6, kind: output, shape index: {}]
  %s7 = sld [smem:[#allocation0]]
  $region34: #{tpu_custom_call.1} parent=0
    _
  %s9 = ssub.s32 1, %s7
  %s10 = scalar_select 0, %s9, %s7
  // Predicated region
  $region2: #{tpu_custom_call.1} parent=0 // pred_check
    _
  $region3: #{tpu_custom_call.1} parent=0 // pred_check_branch
    %12 = sbr.rel (0) target = $region5
  $region4: #{tpu_custom_call.1} parent=0 // pred_region
    _
  $region5: #{tpu_custom_call.1} parent=0 // pred_fallthru
    _
  // Predicated region
  $region6: #{tpu_custom_call.1} parent=0 // pred_check
    _
  $region7: #{tpu_custom_call.1} parent=0 // pred_check_branch
    %14 = sbr.rel (0) target = $region9
  $region8: #{tpu_custom_call.1} parent=0 // pred_region
    _
  $region9: #{tpu_custom_call.1} parent=0 // pred_fallthru
    _
  // Predicated region
  $region10: #{tpu_custom_call.1} parent=0 // pred_check
    _
  $region11: #{tpu_custom_call.1} parent=0 // pred_check_branch
    %16 = sbr.rel (0) target = $region13
  $region12: #{tpu_custom_call.1} parent=0 // pred_region
    _
  $region13: #{tpu_custom_call.1} parent=0 // pred_fallthru
    _
  // Predicated region
  $region14: #{tpu_custom_call.1} parent=0 // pred_check
    _
  $region15: #{tpu_custom_call.1} parent=0 // pred_check_branch
    %18 = sbr.rel (0) target = $region17
  $region16: #{tpu_custom_call.1} parent=0 // pred_region
    _
  $region17: #{tpu_custom_call.1} parent=0 // pred_fallthru
    _
  // Predicated region
  $region18: #{tpu_custom_call.1} parent=0 // pred_check
    _
  $region19: #{tpu_custom_call.1} parent=0 // pred_check_branch
    %20 = sbr.rel (0) target = $region21
  $region20: #{tpu_custom_call.1} parent=0 // pred_region
    _
  $region21: #{tpu_custom_call.1} parent=0 // pred_fallthru
    _
  // Predicated region
  $region22: #{tpu_custom_call.1} parent=0 // pred_check
    _
  $region23: #{tpu_custom_call.1} parent=0 // pred_check_branch
    %22 = sbr.rel (0) target = $region25
  $region24: #{tpu_custom_call.1} parent=0 // pred_region
    _
  $region25: #{tpu_custom_call.1} parent=0 // pred_fallthru
    _
  %v23 = vld [vmem:[%s0] sm:$0xff]
  %v24 = vld [vmem:[%s0 + $0x8] sm:$0xff]
  %v25 = vld [vmem:[%s1] sm:$0xff]
  %v26 = vld [vmem:[%s1 + $0x8] sm:$0xff]
  %v27 = vld [vmem:[%s2] sm:$0x1]
  %v28 = vld [vmem:[%s3] sm:$0xff]
  %v29 = vld [vmem:[%s3 + $0x8] sm:$0xff]
  %v30 = vld [vmem:[%s3 + $0x10] sm:$0xff]
  %32 = vset.pattern.permute.xlu0 0
  %33 = vperm.xlu0 %32, %v28
  %v34 = vpop.permute.xlu0 %33
  %37 = vset.pattern.permute.xlu0 0
  %38 = vperm.xlu0 %37, %v29
  %v39 = vpop.permute.xlu0 %38
  %42 = vset.pattern.permute.xlu0 0
  %43 = vperm.xlu0 %42, %v30
  %v44 = vpop.permute.xlu0 %43
  %v47 = vlaneseq
  %v48 = vshrl.u32 %v47, 7
  %v49 = vsub.s32 0, %v48
  %v50 = vrot.slane %v27, %v49
  %v52 = vadd.f32 %v34, %v50
  %v53 = vadd.f32 %v39, %v50
  %v54 = vadd.f32 %v44, %v50
  %v55 = vlaneseq
  %v56 = vshrl.u32 %v55, 7
  %v57 = vsub.s32 1, %v56
  %v58 = vrot.slane %v23, %v57
  %v59 = vlaneseq
  %v60 = vshrl.u32 %v59, 7
  %v61 = vsub.s32 1, %v60
  %v62 = vrot.slane %v25, %v61
  %v63 = vlaneseq
  %v64 = vshrl.u32 %v63, 7
  %v65 = vsub.s32 0, %v64
  %v66 = vrot.slane %v23, %v65
  %v67 = vlaneseq
  %v68 = vshrl.u32 %v67, 7
  %v69 = vsub.s32 0, %v68
  %v70 = vrot.slane %v25, %v69
  %v71 = vlaneseq
  %v72 = vshrl.u32 %v71, 7
  %v73 = vsub.s32 2, %v72
  %v74 = vrot.slane %v23, %v73
  %v75 = vlaneseq
  %v76 = vshrl.u32 %v75, 7
  %v77 = vsub.s32 2, %v76
  %v78 = vrot.slane %v25, %v77
  %vm79 = vcmp.ge.f32.partialorder %v52, %v58
  %vm80 = vcmp.ge.f32.partialorder %v53, %v58
  %vm81 = vcmp.ge.f32.partialorder %v54, %v58
  %v82 = vsel %vm79, %v58, %v66
  %v83 = vsel %vm80, %v58, %v66
  %v84 = vsel %vm81, %v58, %v66
  %v85 = vsel %vm79, %v62, %v70
  %v86 = vsel %vm80, %v62, %v70
  %v87 = vsel %vm81, %v62, %v70
  %v88 = vsel %vm79, %v74, %v58
  %v89 = vsel %vm80, %v74, %v58
  %v90 = vsel %vm81, %v74, %v58
  %v91 = vsel %vm79, %v78, %v62
  %v92 = vsel %vm80, %v78, %v62
  %v93 = vsel %vm81, %v78, %v62
  %v94 = vlaneseq
  %v95 = vshrl.u32 %v94, 7
  %v96 = vsub.s32 3, %v95
  %v97 = vrot.slane %v23, %v96
  %v98 = vlaneseq
  %v99 = vshrl.u32 %v98, 7
  %v100 = vsub.s32 3, %v99
  %v101 = vrot.slane %v25, %v100
  %vm102 = vcmp.ge.f32.partialorder %v52, %v74
  %vm103 = vcmp.ge.f32.partialorder %v53, %v74
  %vm104 = vcmp.ge.f32.partialorder %v54, %v74
  %v105 = vsel %vm102, %v74, %v82
  %v106 = vsel %vm103, %v74, %v83
  %v107 = vsel %vm104, %v74, %v84
  %v108 = vsel %vm102, %v78, %v85
  %v109 = vsel %vm103, %v78, %v86
  %v110 = vsel %vm104, %v78, %v87
  %v111 = vsel %vm102, %v97, %v88
  %v112 = vsel %vm103, %v97, %v89
  %v113 = vsel %vm104, %v97, %v90
  %v114 = vsel %vm102, %v101, %v91
  %v115 = vsel %vm103, %v101, %v92
  %v116 = vsel %vm104, %v101, %v93
  %v117 = vlaneseq
  %v118 = vshrl.u32 %v117, 7
  %v119 = vsub.s32 4, %v118
  %v120 = vrot.slane %v23, %v119
  %v121 = vlaneseq
  %v122 = vshrl.u32 %v121, 7
  %v123 = vsub.s32 4, %v122
  %v124 = vrot.slane %v25, %v123
  %vm125 = vcmp.ge.f32.partialorder %v52, %v97
  %vm126 = vcmp.ge.f32.partialorder %v53, %v97
  %vm127 = vcmp.ge.f32.partialorder %v54, %v97
  %v128 = vsel %vm125, %v97, %v105
  %v129 = vsel %vm126, %v97, %v106
  %v130 = vsel %vm127, %v97, %v107
  %v131 = vsel %vm125, %v101, %v108
  %v132 = vsel %vm126, %v101, %v109
  %v133 = vsel %vm127, %v101, %v110
  %v134 = vsel %vm125, %v120, %v111
  %v135 = vsel %vm126, %v120, %v112
  %v136 = vsel %vm127, %v120, %v113
  %v137 = vsel %vm125, %v124, %v114
  %v138 = vsel %vm126, %v124, %v115
  %v139 = vsel %vm127, %v124, %v116
  %v140 = vlaneseq
  %v141 = vshrl.u32 %v140, 7
  %v142 = vsub.s32 5, %v141
  %v143 = vrot.slane %v23, %v142
  %v144 = vlaneseq
  %v145 = vshrl.u32 %v144, 7
  %v146 = vsub.s32 5, %v145
  %v147 = vrot.slane %v25, %v146
  %vm148 = vcmp.ge.f32.partialorder %v52, %v120
  %vm149 = vcmp.ge.f32.partialorder %v53, %v120
  %vm150 = vcmp.ge.f32.partialorder %v54, %v120
  %v151 = vsel %vm148, %v120, %v128
  %v152 = vsel %vm149, %v120, %v129
  %v153 = vsel %vm150, %v120, %v130
  %v154 = vsel %vm148, %v124, %v131
  %v155 = vsel %vm149, %v124, %v132
  %v156 = vsel %vm150, %v124, %v133
  %v157 = vsel %vm148, %v143, %v134
  %v158 = vsel %vm149, %v143, %v135
  %v159 = vsel %vm150, %v143, %v136
  %v160 = vsel %vm148, %v147, %v137
  %v161 = vsel %vm149, %v147, %v138
  %v162 = vsel %vm150, %v147, %v139
  %v163 = vlaneseq
  %v164 = vshrl.u32 %v163, 7
  %v165 = vsub.s32 6, %v164
  %v166 = vrot.slane %v23, %v165
  %v167 = vlaneseq
  %v168 = vshrl.u32 %v167, 7
  %v169 = vsub.s32 6, %v168
  %v170 = vrot.slane %v25, %v169
  %vm171 = vcmp.ge.f32.partialorder %v52, %v143
  %vm172 = vcmp.ge.f32.partialorder %v53, %v143
  %vm173 = vcmp.ge.f32.partialorder %v54, %v143
  %v174 = vsel %vm171, %v143, %v151
  %v175 = vsel %vm172, %v143, %v152
  %v176 = vsel %vm173, %v143, %v153
  %v177 = vsel %vm171, %v147, %v154
  %v178 = vsel %vm172, %v147, %v155
  %v179 = vsel %vm173, %v147, %v156
  %v180 = vsel %vm171, %v166, %v157
  %v181 = vsel %vm172, %v166, %v158
  %v182 = vsel %vm173, %v166, %v159
  %v183 = vsel %vm171, %v170, %v160
  %v184 = vsel %vm172, %v170, %v161
  %v185 = vsel %vm173, %v170, %v162
  %v186 = vlaneseq
  %v187 = vshrl.u32 %v186, 7
  %v188 = vsub.s32 7, %v187
  %v189 = vrot.slane %v23, %v188
  %v190 = vlaneseq
  %v191 = vshrl.u32 %v190, 7
  %v192 = vsub.s32 7, %v191
  %v193 = vrot.slane %v25, %v192
  %vm194 = vcmp.ge.f32.partialorder %v52, %v166
  %vm195 = vcmp.ge.f32.partialorder %v53, %v166
  %vm196 = vcmp.ge.f32.partialorder %v54, %v166
  %v197 = vsel %vm194, %v166, %v174
  %v198 = vsel %vm195, %v166, %v175
  %v199 = vsel %vm196, %v166, %v176
  %v200 = vsel %vm194, %v170, %v177
  %v201 = vsel %vm195, %v170, %v178
  %v202 = vsel %vm196, %v170, %v179
  %v203 = vsel %vm194, %v189, %v180
  %v204 = vsel %vm195, %v189, %v181
  %v205 = vsel %vm196, %v189, %v182
  %v206 = vsel %vm194, %v193, %v183
  %v207 = vsel %vm195, %v193, %v184
  %v208 = vsel %vm196, %v193, %v185
  %v209 = vlaneseq
  %v210 = vshrl.u32 %v209, 7
  %v211 = vsub.s32 0, %v210
  %v212 = vrot.slane %v24, %v211
  %v213 = vlaneseq
  %v214 = vshrl.u32 %v213, 7
  %v215 = vsub.s32 0, %v214
  %v216 = vrot.slane %v26, %v215
  %vm217 = vcmp.ge.f32.partialorder %v52, %v189
  %vm218 = vcmp.ge.f32.partialorder %v53, %v189
  %vm219 = vcmp.ge.f32.partialorder %v54, %v189
  %v220 = vsel %vm217, %v189, %v197
  %v221 = vsel %vm218, %v189, %v198
  %v222 = vsel %vm219, %v189, %v199
  %v223 = vsel %vm217, %v193, %v200
  %v224 = vsel %vm218, %v193, %v201
  %v225 = vsel %vm219, %v193, %v202
  %v226 = vsel %vm217, %v212, %v203
  %v227 = vsel %vm218, %v212, %v204
  %v228 = vsel %vm219, %v212, %v205
  %v229 = vsel %vm217, %v216, %v206
  %v230 = vsel %vm218, %v216, %v207
  %v231 = vsel %vm219, %v216, %v208
  %v232 = vlaneseq
  %v233 = vshrl.u32 %v232, 7
  %v234 = vsub.s32 1, %v233
  %v235 = vrot.slane %v24, %v234
  %v236 = vlaneseq
  %v237 = vshrl.u32 %v236, 7
  %v238 = vsub.s32 1, %v237
  %v239 = vrot.slane %v26, %v238
  %vm240 = vcmp.ge.f32.partialorder %v52, %v212
  %vm241 = vcmp.ge.f32.partialorder %v53, %v212
  %vm242 = vcmp.ge.f32.partialorder %v54, %v212
  %v243 = vsel %vm240, %v212, %v220
  %v244 = vsel %vm241, %v212, %v221
  %v245 = vsel %vm242, %v212, %v222
  %v246 = vsel %vm240, %v216, %v223
  %v247 = vsel %vm241, %v216, %v224
  %v248 = vsel %vm242, %v216, %v225
  %v249 = vsel %vm240, %v235, %v226
  %v250 = vsel %vm241, %v235, %v227
  %v251 = vsel %vm242, %v235, %v228
  %v252 = vsel %vm240, %v239, %v229
  %v253 = vsel %vm241, %v239, %v230
  %v254 = vsel %vm242, %v239, %v231
  %v255 = vlaneseq
  %v256 = vshrl.u32 %v255, 7
  %v257 = vsub.s32 2, %v256
  %v258 = vrot.slane %v24, %v257
  %v259 = vlaneseq
  %v260 = vshrl.u32 %v259, 7
  %v261 = vsub.s32 2, %v260
  %v262 = vrot.slane %v26, %v261
  %vm263 = vcmp.ge.f32.partialorder %v52, %v235
  %vm264 = vcmp.ge.f32.partialorder %v53, %v235
  %vm265 = vcmp.ge.f32.partialorder %v54, %v235
  %v266 = vsel %vm263, %v235, %v243
  %v267 = vsel %vm264, %v235, %v244
  %v268 = vsel %vm265, %v235, %v245
  %v269 = vsel %vm263, %v239, %v246
  %v270 = vsel %vm264, %v239, %v247
  %v271 = vsel %vm265, %v239, %v248
  %v272 = vsel %vm263, %v258, %v249
  %v273 = vsel %vm264, %v258, %v250
  %v274 = vsel %vm265, %v258, %v251
  %v275 = vsel %vm263, %v262, %v252
  %v276 = vsel %vm264, %v262, %v253
  %v277 = vsel %vm265, %v262, %v254
  %v278 = vlaneseq
  %v279 = vshrl.u32 %v278, 7
  %v280 = vsub.s32 3, %v279
  %v281 = vrot.slane %v24, %v280
  %v282 = vlaneseq
  %v283 = vshrl.u32 %v282, 7
  %v284 = vsub.s32 3, %v283
  %v285 = vrot.slane %v26, %v284
  %vm286 = vcmp.ge.f32.partialorder %v52, %v258
  %vm287 = vcmp.ge.f32.partialorder %v53, %v258
  %vm288 = vcmp.ge.f32.partialorder %v54, %v258
  %v289 = vsel %vm286, %v258, %v266
  %v290 = vsel %vm287, %v258, %v267
  %v291 = vsel %vm288, %v258, %v268
  %v292 = vsel %vm286, %v262, %v269
  %v293 = vsel %vm287, %v262, %v270
  %v294 = vsel %vm288, %v262, %v271
  %v295 = vsel %vm286, %v281, %v272
  %v296 = vsel %vm287, %v281, %v273
  %v297 = vsel %vm288, %v281, %v274
  %v298 = vsel %vm286, %v285, %v275
  %v299 = vsel %vm287, %v285, %v276
  %v300 = vsel %vm288, %v285, %v277
  %v301 = vlaneseq
  %v302 = vshrl.u32 %v301, 7
  %v303 = vsub.s32 4, %v302
  %v304 = vrot.slane %v24, %v303
  %v305 = vlaneseq
  %v306 = vshrl.u32 %v305, 7
  %v307 = vsub.s32 4, %v306
  %v308 = vrot.slane %v26, %v307
  %vm309 = vcmp.ge.f32.partialorder %v52, %v281
  %vm310 = vcmp.ge.f32.partialorder %v53, %v281
  %vm311 = vcmp.ge.f32.partialorder %v54, %v281
  %v312 = vsel %vm309, %v281, %v289
  %v313 = vsel %vm310, %v281, %v290
  %v314 = vsel %vm311, %v281, %v291
  %v315 = vsel %vm309, %v285, %v292
  %v316 = vsel %vm310, %v285, %v293
  %v317 = vsel %vm311, %v285, %v294
  %v318 = vsel %vm309, %v304, %v295
  %v319 = vsel %vm310, %v304, %v296
  %v320 = vsel %vm311, %v304, %v297
  %v321 = vsel %vm309, %v308, %v298
  %v322 = vsel %vm310, %v308, %v299
  %v323 = vsel %vm311, %v308, %v300
  %v324 = vlaneseq
  %v325 = vshrl.u32 %v324, 7
  %v326 = vsub.s32 5, %v325
  %v327 = vrot.slane %v24, %v326
  %v328 = vlaneseq
  %v329 = vshrl.u32 %v328, 7
  %v330 = vsub.s32 5, %v329
  %v331 = vrot.slane %v26, %v330
  %vm332 = vcmp.ge.f32.partialorder %v52, %v304
  %vm333 = vcmp.ge.f32.partialorder %v53, %v304
  %vm334 = vcmp.ge.f32.partialorder %v54, %v304
  %v335 = vsel %vm332, %v304, %v312
  %v336 = vsel %vm333, %v304, %v313
  %v337 = vsel %vm334, %v304, %v314
  %v338 = vsel %vm332, %v308, %v315
  %v339 = vsel %vm333, %v308, %v316
  %v340 = vsel %vm334, %v308, %v317
  %v341 = vsel %vm332, %v327, %v318
  %v342 = vsel %vm333, %v327, %v319
  %v343 = vsel %vm334, %v327, %v320
  %v344 = vsel %vm332, %v331, %v321
  %v345 = vsel %vm333, %v331, %v322
  %v346 = vsel %vm334, %v331, %v323
  %v347 = vlaneseq
  %v348 = vshrl.u32 %v347, 7
  %v349 = vsub.s32 6, %v348
  %v350 = vrot.slane %v24, %v349
  %v351 = vlaneseq
  %v352 = vshrl.u32 %v351, 7
  %v353 = vsub.s32 6, %v352
  %v354 = vrot.slane %v26, %v353
  %vm355 = vcmp.ge.f32.partialorder %v52, %v327
  %vm356 = vcmp.ge.f32.partialorder %v53, %v327
  %vm357 = vcmp.ge.f32.partialorder %v54, %v327
  %v358 = vsel %vm355, %v327, %v335
  %v359 = vsel %vm356, %v327, %v336
  %v360 = vsel %vm357, %v327, %v337
  %v361 = vsel %vm355, %v331, %v338
  %v362 = vsel %vm356, %v331, %v339
  %v363 = vsel %vm357, %v331, %v340
  %v364 = vsel %vm355, %v350, %v341
  %v365 = vsel %vm356, %v350, %v342
  %v366 = vsel %vm357, %v350, %v343
  %v367 = vsel %vm355, %v354, %v344
  %v368 = vsel %vm356, %v354, %v345
  %v369 = vsel %vm357, %v354, %v346
  %v370 = vlaneseq
  %v371 = vshrl.u32 %v370, 7
  %v372 = vsub.s32 7, %v371
  %v373 = vrot.slane %v24, %v372
  %v374 = vlaneseq
  %v375 = vshrl.u32 %v374, 7
  %v376 = vsub.s32 7, %v375
  %v377 = vrot.slane %v26, %v376
  %vm378 = vcmp.ge.f32.partialorder %v52, %v350
  %vm379 = vcmp.ge.f32.partialorder %v53, %v350
  %vm380 = vcmp.ge.f32.partialorder %v54, %v350
  %v381 = vsel %vm378, %v350, %v358
  %v382 = vsel %vm379, %v350, %v359
  %v383 = vsel %vm380, %v350, %v360
  %v384 = vsel %vm378, %v354, %v361
  %v385 = vsel %vm379, %v354, %v362
  %v386 = vsel %vm380, %v354, %v363
  %v387 = vsel %vm378, %v373, %v364
  %v388 = vsel %vm379, %v373, %v365
  %v389 = vsel %vm380, %v373, %v366
  %v390 = vsel %vm378, %v377, %v367
  %v391 = vsel %vm379, %v377, %v368
  %v392 = vsel %vm380, %v377, %v369
  %v393 = vsub.f32 %v390, %v384
  %v394 = vsub.f32 %v391, %v385
  %v395 = vsub.f32 %v392, %v386
  %v396 = vsub.f32 %v52, %v381
  %v397 = vsub.f32 %v53, %v382
  %v398 = vsub.f32 %v54, %v383
  %v399 = vmul.f32 %v393, %v396
  %v400 = vmul.f32 %v394, %v397
  %v401 = vmul.f32 %v395, %v398
  %v402 = vsub.f32 %v387, %v381
  %v403 = vsub.f32 %v388, %v382
  %v404 = vsub.f32 %v389, %v383
  %v405 = vrcp.pop %v402
  %v406 = vmul.f32 %v399, %v405
  %v407 = vrcp.pop %v403
  %v408 = vmul.f32 %v400, %v407
  %v409 = vrcp.pop %v404
  %v410 = vmul.f32 %v401, %v409
  %v411 = vadd.f32 %v384, %v406
  %v412 = vadd.f32 %v385, %v408
  %v413 = vadd.f32 %v386, %v410
  %vm414 = vcmp.lt.f32.partialorder %v52, %v66
  %vm415 = vcmp.lt.f32.partialorder %v53, %v66
  %vm416 = vcmp.lt.f32.partialorder %v54, %v66
  %v417 = vsel %vm414, %v70, %v411
  %v418 = vsel %vm415, %v70, %v412
  %v419 = vsel %vm416, %v70, %v413
  %vm420 = vcmp.gt.f32.partialorder %v52, %v373
  %vm421 = vcmp.gt.f32.partialorder %v53, %v373
  %vm422 = vcmp.gt.f32.partialorder %v54, %v373
  %v423 = vsel %vm420, %v377, %v417
  %v424 = vsel %vm421, %v377, %v418
  %v425 = vsel %vm422, %v377, %v419
  %vm426 = vcmask 15360
  %427 = vst.msk [vmem:[#allocation2] sm:$0xff] %vm426, %v423
  %428 = vst.msk [vmem:[#allocation2 + $0x8] sm:$0xff] %vm426, %v424
  %429 = vst.msk [vmem:[#allocation2 + $0x10] sm:$0xff] %vm426, %v425
  %vm430 = vcmask 8192
  %431 = vst.msk [vmem:[#allocation2 + $0x18] sm:$0x1] %vm430, %v27
  %v432 = vld [vmem:[%s4] sm:$0xff]
  %v433 = vld [vmem:[%s4 + $0x8] sm:$0xff]
  %v434 = vld [vmem:[%s4 + $0x10] sm:$0xff]
  %v435 = vld [vmem:[%s4 + $0x18] sm:$0xff]
  %v436 = vld [vmem:[#allocation2] sm:$0xff]
  %v437 = vld [vmem:[#allocation2 + $0x8] sm:$0xff]
  %v438 = vld [vmem:[#allocation2 + $0x10] sm:$0xff]
  %v439 = vld [vmem:[#allocation2 + $0x18] sm:$0x1]
  %v440 = vld [vmem:[%s5] sm:$0xff]
  %v441 = vld [vmem:[%s5 + $0x8] sm:$0xff]
  %v442 = vld [vmem:[%s5 + $0x10] sm:$0xff]
  %v443 = vld [vmem:[%s5 + $0x18] sm:$0xff]
  %445 = vset.pattern.permute.xlu0 0
  %446 = vperm.xlu0 %445, %v440
  %v447 = vpop.permute.xlu0 %446
  %450 = vset.pattern.permute.xlu0 0
  %451 = vperm.xlu0 %450, %v441
  %v452 = vpop.permute.xlu0 %451
  %455 = vset.pattern.permute.xlu0 0
  %456 = vperm.xlu0 %455, %v442
  %v457 = vpop.permute.xlu0 %456
  %460 = vset.pattern.permute.xlu0 0
  %461 = vperm.xlu0 %460, %v443
  %v462 = vpop.permute.xlu0 %461
  %vm464 = vcmask 203776
  %v466 = vsel %vm464, %v432, 0
  %v469 = vsel %vm464, %v433, 0
  %v472 = vsel %vm464, %v434, 0
  %v475 = vsel %vm464, %v435, 0
  %vm477 = vcmask 1040384
  %v479 = vsel %vm477, %v439, 0
  %481 = vmatprep.subr.mxu0 0.0
  %482 = vmatpush1.msra.mxu0 0.0
  %483 = vmatprep.subr.mxu0 0.0
  %484 = vmatpush1.msra.mxu0 0.0
  %485 = vmatprep.subr.mxu0 0.0
  %486 = vmatpush1.msra.mxu0 0.0
  %487 = vmatprep.subr.mxu0 0.0
  %488 = vmatpush1.msra.mxu0 0.0
  %489 = vmatprep.subr.mxu0 0.0
  %490 = vmatpush1.msra.mxu0 0.0
  %491 = vmatprep.subr.mxu0 0.0
  %492 = vmatpush1.msra.mxu0 0.0
  %493 = vmatprep.subr.mxu0 0.0
  %494 = vmatpush1.msra.mxu0 0.0
  %495 = vmatprep.subr.mxu0 0.0
  %496 = vmatpush1.msra.mxu0 0.0
  %497 = vmatprep.subr.mxu0 0.0
  %498 = vmatpush1.msra.mxu0 0.0
  %499 = vmatprep.subr.mxu0 0.0
  %500 = vmatpush1.msra.mxu0 0.0
  %501 = vmatprep.subr.mxu0 0.0
  %502 = vmatpush1.msra.mxu0 0.0
  %503 = vmatprep.subr.mxu0 0.0
  %504 = vmatpush1.msra.mxu0 0.0
  %505 = vmatprep.subr.mxu0 0.0
  %506 = vmatpush1.msra.mxu0 %v479
  %507 = vmatprep.subr.mxu0 0.0
  %508 = vmatpush1.msra.mxu0 %v438
  %509 = vmatprep.subr.mxu0 0.0
  %510 = vmatpush1.msra.mxu0 %v437
  %511 = vmatprep.subr.mxu0 0.0
  %512 = vmatpush1.msra.mxu0 %v436
  %513 = vmatprep.subr.mxu0 0.0
  %514 = vmatpush2.msra.mxu0 0.0
  %515 = vmatprep.subr.mxu0 0.0
  %516 = vmatpush2.msra.mxu0 0.0
  %517 = vmatprep.subr.mxu0 0.0
  %518 = vmatpush2.msra.mxu0 0.0
  %519 = vmatprep.subr.mxu0 0.0
  %520 = vmatpush2.msra.mxu0 0.0
  %521 = vmatprep.subr.mxu0 0.0
  %522 = vmatpush2.msra.mxu0 0.0
  %523 = vmatprep.subr.mxu0 0.0
  %524 = vmatpush2.msra.mxu0 0.0
  %525 = vmatprep.subr.mxu0 0.0
  %526 = vmatpush2.msra.mxu0 0.0
  %527 = vmatprep.subr.mxu0 0.0
  %528 = vmatpush2.msra.mxu0 0.0
  %529 = vmatprep.subr.mxu0 0.0
  %530 = vmatpush2.msra.mxu0 0.0
  %531 = vmatprep.subr.mxu0 0.0
  %532 = vmatpush2.msra.mxu0 0.0
  %533 = vmatprep.subr.mxu0 0.0
  %534 = vmatpush2.msra.mxu0 0.0
  %535 = vmatprep.subr.mxu0 0.0
  %536 = vmatpush2.msra.mxu0 0.0
  %537 = vmatprep.subr.mxu0 0.0
  %538 = vmatpush2.msra.mxu0 0.0
  %539 = vmatprep.subr.mxu0 0.0
  %540 = vmatpush2.msra.mxu0 0.0
  %541 = vmatprep.subr.mxu0 0.0
  %542 = vmatpush2.msra.mxu0 0.0
  %543 = vmatprep.subr.mxu0 0.0
  %544 = vmatpush2.msra.mxu0 0.0
  %545 = vmatprep.mubr.f32.mxu0 0.0
  %546 = vmatmul.mubr.f32.gmra.mxu0 %v466
  %v547 = vpop.f32.mrf.mxu0
  %v548 = vadd.f32 %v447, %v547
  %v549 = vpop.f32.mrf.mxu0
  %550 = vmatprep.mubr.f32.mxu0 0.0
  %551 = vmatmul.mubr.f32.gmra.mxu0 %v469
  %v552 = vpop.f32.mrf.mxu0
  %v553 = vadd.f32 %v452, %v552
  %v554 = vpop.f32.mrf.mxu0
  %555 = vmatprep.mubr.f32.mxu0 0.0
  %556 = vmatmul.mubr.f32.gmra.mxu0 %v472
  %v557 = vpop.f32.mrf.mxu0
  %v558 = vadd.f32 %v457, %v557
  %v559 = vpop.f32.mrf.mxu0
  %560 = vmatprep.mubr.f32.mxu0 0.0
  %561 = vmatmul.mubr.f32.gmra.mxu0 %v475
  %v562 = vpop.f32.mrf.mxu0
  %v563 = vadd.f32 %v462, %v562
  %v564 = vpop.f32.mrf.mxu0
  %565 = vdwg.mxu0
  %566 = vst.msk [vmem:[%s6] sm:$0xff] %vm426, %v548
  %567 = vst.msk [vmem:[%s6 + $0x8] sm:$0xff] %vm426, %v553
  %568 = vst.msk [vmem:[%s6 + $0x10] sm:$0xff] %vm426, %v558
  %569 = vst.msk [vmem:[%s6 + $0x18] sm:$0xff] %vm426, %v563
  %vm570 = vcmask 12292
  %571 = vst.msk [vmem:[%s6 + $0x1c] sm:$0x10] %vm570, %v424
  // Predicated region
  $region26: #{tpu_custom_call.1} parent=0 // pred_check
    _
  $region27: #{tpu_custom_call.1} parent=0 // pred_check_branch
    %573 = sbr.rel (0) target = $region29
  $region28: #{tpu_custom_call.1} parent=0 // pred_region
    _
  $region29: #{tpu_custom_call.1} parent=0 // pred_fallthru
    _
  // Predicated region
  $region30: #{tpu_custom_call.1} parent=0 // pred_check
    _
  $region31: #{tpu_custom_call.1} parent=0 // pred_check_branch
    %575 = sbr.rel (0) target = $region33
  $region32: #{tpu_custom_call.1} parent=0 // pred_region
    _
  $region33: #{tpu_custom_call.1} parent=0 // pred_fallthru
    _

</llo_original>
